<compile_context>
chip_gen: v5e
topology: v5e:2x2
jax: 0.10.0
libtpu: 0.0.40
codegen_flags: <defaults>
</compile_context>

<pallas_src>
import jax
import jax.numpy as jnp
from jax.experimental import pallas as pl
from jax.experimental.pallas import tpu as pltpu


def decoder_kernel(hpre_ref, b1_ref, w2_ref, b2_ref, o_ref):
    # hpre_ref: (NHID, TILE_E)  pre-activation (z[row]@W1_top + z[col]@W1_bot)
    # b1_ref:   (NHID, 1) f32   lin1 bias (column, broadcast along lanes)
    # w2_ref:   (NHID, 1) f32   lin2 weight (column)
    # b2_ref:   (1,)      f32   lin2 bias, in SMEM (scalar)
    # o_ref:    (1, TILE_E) f32 lane-dense output block
    x = hpre_ref[...].astype(jnp.float32)                     # upcast if bf16 stream
    h = jnp.maximum(x + b1_ref[...], 0.0)                     # ReLU on VPU (f32)
    acc = jnp.sum(h * w2_ref[...], axis=0, keepdims=True)     # VPU mul + sublane reduce
    o_ref[...] = (acc + b2_ref[0]).astype(o_ref.dtype)


def decoder_forward(z, edge_index, w1, b1, w2, b2, *,
                    tile_e=1024, stream_dtype=jnp.float32):
    """Edge scores for VGAE Decoder.

    z:          (N, d) node embeddings, f32
    edge_index: (2, E) int32 indices (row, col)
    w1:         (nhid, nhid)  == lin1.weight^T  (in_features, out_features), nhid = 2*d
    b1:         (nhid,)       == lin1.bias
    w2:         (nhid, 1)     == lin2.weight^T
    b2:         (1,)          == lin2.bias
    Returns (E,) f32 edge scores == Decoder.forward(z, adj).view(-1).
    """
    assert tile_e % 128 == 0, "tile_e must be a multiple of 128 (lane width)"
    N, d = z.shape
    nhid = w1.shape[0]
    assert nhid == 2 * d, "z latent dim must be nhid // 2"

    row, col = edge_index[0], edge_index[1]
    E = row.shape[0]
    E_pad = ((E + tile_e - 1) // tile_e) * tile_e
    pad = E_pad - E
    if pad:
        # pad with dummy node 0; padded scores are computed but sliced off below
        row = jnp.concatenate([row, jnp.zeros((pad,), row.dtype)])
        col = jnp.concatenate([col, jnp.zeros((pad,), col.dtype)])

    # --- algebraic restructure: per-node projections computed once (tiny) ---
    pa_t = jnp.dot(z, w1[:d, :], preferred_element_type=jnp.float32).T   # (nhid, N)
    pb_t = jnp.dot(z, w1[d:, :], preferred_element_type=jnp.float32).T   # (nhid, N)
    # gather + add, fused by XLA, written transposed so edges land on lanes
    hpre_t = (pa_t[:, row] + pb_t[:, col]).astype(stream_dtype)          # (nhid, E_pad)

    b1c = jnp.reshape(b1, (nhid, 1)).astype(jnp.float32)
    w2c = jnp.reshape(w2, (nhid, 1)).astype(jnp.float32)
    b2s = jnp.reshape(b2, (1,)).astype(jnp.float32)

    grid = (E_pad // tile_e,)
    out = pl.pallas_call(
        decoder_kernel,
        out_shape=jax.ShapeDtypeStruct((1, E_pad), jnp.float32),
        grid_spec=pltpu.PrefetchScalarGridSpec(
            num_scalar_prefetch=0,
            grid=grid,
            in_specs=[
                pl.BlockSpec((nhid, tile_e), lambda i: (0, i)),       # hpre^T tile
                pl.BlockSpec((nhid, 1), lambda i: (0, 0)),            # b1 (resident)
                pl.BlockSpec((nhid, 1), lambda i: (0, 0)),            # w2 (resident)
                pl.BlockSpec(memory_space=pltpu.MemorySpace.SMEM),    # b2 scalar
            ],
            out_specs=pl.BlockSpec((1, tile_e), lambda i: (0, i)),    # lane-dense out
        ),
        compiler_params=pltpu.CompilerParams(
            dimension_semantics=("parallel",),   # megacore-shardable on v7x
        ),
    )(hpre_t, b1c, w2c, b2s)

    return out.reshape(-1)[:E]


if __name__ == "__main__":
    key = jax.random.PRNGKey(0)
    k_z, k_e1, k_e2, k_w1, k_b1, k_w2, k_b2 = jax.random.split(key, 7)

    nhid = 32          # Linear(nhid, nhid); concat input dim
    d = nhid // 2      # latent dim of z (so cat([z,z]) has dim nhid)
    N = 256            # number of nodes
    E = 8000           # number of edges (NOT a multiple of tile_e -> tests tail handling)

    z = jax.random.normal(k_z, (N, d), dtype=jnp.float32)
    row = jax.random.randint(k_e1, (E,), 0, N, dtype=jnp.int32)
    col = jax.random.randint(k_e2, (E,), 0, N, dtype=jnp.int32)
    edge_index = jnp.stack([row, col], axis=0)               # (2, E)

    # Deterministic parameter init (uniform, like torch.nn.Linear bounds).
    # Stored as (in_features, out_features) = W^T for row-major math.
    bound1 = 1.0 / (nhid ** 0.5)
    w1 = jax.random.uniform(k_w1, (nhid, nhid), jnp.float32, -bound1, bound1)
    b1 = jax.random.uniform(k_b1, (nhid,), jnp.float32, -bound1, bound1)
    w2 = jax.random.uniform(k_w2, (nhid, 1), jnp.float32, -bound1, bound1)
    b2 = jax.random.uniform(k_b2, (1,), jnp.float32, -bound1, bound1)

    # f32 path
    out = decoder_forward(z, edge_index, w1, b1, w2, b2)
    jax.block_until_ready(out)

    # Pure-JAX reference (original concat formulation).
    x_ref = jnp.concatenate([z[row], z[col]], axis=-1)
    h_ref = jnp.maximum(x_ref @ w1 + b1[None, :], 0.0)
    ref = (h_ref @ w2 + b2[None, :]).reshape(-1)
    assert out.shape == (E,)
    assert jnp.allclose(out, ref, atol=1e-4, rtol=1e-4), \
        float(jnp.max(jnp.abs(out - ref)))

    # bf16-streamed path (halves the dominant HBM stream; math stays f32)
    out_bf16 = decoder_forward(z, edge_index, w1, b1, w2, b2,
                               stream_dtype=jnp.bfloat16)
    jax.block_until_ready(out_bf16)
    assert out_bf16.shape == (E,)
    assert jnp.allclose(out_bf16, ref, atol=2e-2, rtol=2e-2), \
        float(jnp.max(jnp.abs(out_bf16 - ref)))

    print("KERNEL_OK")
</pallas_src>

<mosaic_0001>
module attributes {stable_mosaic.version = 11 : i64} {
  func.func @decoder_kernel(%arg0: i32, %arg1: memref<32x1024xf32, #tpu.memory_space<vmem>>, %arg2: memref<32x1xf32, #tpu.memory_space<vmem>>, %arg3: memref<32x1xf32, #tpu.memory_space<vmem>>, %arg4: memref<1xf32, #tpu.memory_space<smem>>, %arg5: memref<1x1024xf32, #tpu.memory_space<vmem>>) attributes {dimension_semantics = [#tpu.dimension_semantics<parallel>], iteration_bounds = array<i64: 8>, scalar_prefetch = 0 : i64, scratch_operands = 0 : i64, tpu.core_type = #tpu.core_type<tc>, window_params = [{transform_indices = @transform_0, window_bounds = array<i64: 32, 1024>}, {pipeline_mode = #tpu.pipeline_mode<synchronous>, transform_indices = @transform_1, window_bounds = array<i64: 32, 1>}, {pipeline_mode = #tpu.pipeline_mode<synchronous>, transform_indices = @transform_2, window_bounds = array<i64: 32, 1>}, {transform_indices = @transform_3, window_bounds = array<i64: 1>}, {transform_indices = @transform_4, window_bounds = array<i64: 1, 1024>}]} {
    %c0 = arith.constant 0 : index
    %c0_0 = arith.constant 0 : index
    %0 = vector.load %arg1[%c0, %c0_0] : memref<32x1024xf32, #tpu.memory_space<vmem>>, vector<32x1024xf32>
    %c0_1 = arith.constant 0 : index
    %c0_2 = arith.constant 0 : index
    %1 = vector.load %arg2[%c0_1, %c0_2] : memref<32x1xf32, #tpu.memory_space<vmem>>, vector<32x1xf32>
    %2 = vector.broadcast %1 : vector<32x1xf32> to vector<32x1024xf32>
    %3 = arith.addf %0, %2 : vector<32x1024xf32>
    %cst = arith.constant 0.000000e+00 : f32
    %4 = vector.broadcast %cst : f32 to vector<32x1024xf32>
    %5 = arith.maximumf %3, %4 : vector<32x1024xf32>
    %c0_3 = arith.constant 0 : index
    %c0_4 = arith.constant 0 : index
    %6 = vector.load %arg3[%c0_3, %c0_4] : memref<32x1xf32, #tpu.memory_space<vmem>>, vector<32x1xf32>
    %7 = vector.broadcast %6 : vector<32x1xf32> to vector<32x1024xf32>
    %8 = arith.mulf %5, %7 : vector<32x1024xf32>
    %cst_5 = arith.constant dense<0.000000e+00> : vector<1024xf32>
    %9 = vector.multi_reduction <add>, %8, %cst_5 [0] : vector<32x1024xf32> to vector<1024xf32>
    %10 = vector.shape_cast %9 : vector<1024xf32> to vector<1x1024xf32>
    %c0_6 = arith.constant 0 : index
    %11 = memref.load %arg4[%c0_6] : memref<1xf32, #tpu.memory_space<smem>>
    %12 = vector.broadcast %11 : f32 to vector<1x1024xf32>
    %13 = arith.addf %10, %12 : vector<1x1024xf32>
    %c0_7 = arith.constant 0 : index
    %c0_8 = arith.constant 0 : index
    %14 = vector.load %arg5[%c0_7, %c0_8] : memref<1x1024xf32, #tpu.memory_space<vmem>>, vector<1x1024xf32>
    tpu.vector_store %arg5[%c0_7, %c0_8], %13 {strides = array<i32>} : memref<1x1024xf32, #tpu.memory_space<vmem>>, vector<1x1024xf32>,
    return
  }
  func.func @transform_0(%arg0: i32) -> (i32, i32) {
    %c0_i32 = arith.constant 0 : i32
    %c0_i32_0 = arith.constant 0 : i32
    return %c0_i32, %arg0 : i32, i32
  }
  func.func @transform_1(%arg0: i32) -> (i32, i32) {
    %c0_i32 = arith.constant 0 : i32
    %c0_i32_0 = arith.constant 0 : i32
    %c0_i32_1 = arith.constant 0 : i32
    return %c0_i32, %c0_i32_0 : i32, i32
  }
  func.func @transform_2(%arg0: i32) -> (i32, i32) {
    %c0_i32 = arith.constant 0 : i32
    %c0_i32_0 = arith.constant 0 : i32
    %c0_i32_1 = arith.constant 0 : i32
    return %c0_i32, %c0_i32_0 : i32, i32
  }
  func.func @transform_3(%arg0: i32) -> i32 {
    %c0_i32 = arith.constant 0 : i32
    %c0_i32_0 = arith.constant 0 : i32
    return %c0_i32 : i32
  }
  func.func @transform_4(%arg0: i32) -> (i32, i32) {
    %c0_i32 = arith.constant 0 : i32
    %c0_i32_0 = arith.constant 0 : i32
    return %c0_i32, %arg0 : i32, i32
  }
}

</mosaic_0001>

<llo_original>
// kernel: tpu_custom_call.1
$region0: #{tpu_custom_call.1}
  #allocation0 [shape = 'u32[]', space=smem, size = 0x4, offset = 0x4, fixed_abs, tag = 'smem constant byte address 0x4 - core index']
  #allocation1 [shape = 'u32[72,128]{1,0:T(1,128)}', space=vmem, size = 0x9000, scoped, tag = 'internal scratch']
  #allocation2 [shape = 'f32[1]{0:T(128)S(6)}', space=smem, size = 0x200, scoped, tag = 'scoped memory for tpu_custom_call.1']
  %s0 = inlined_call_operand.hbm [shape: f32[32,8192], index: 0, kind: input, shape index: {}]
  %s1 = inlined_call_operand.vmem [shape: f32[32,1], index: 1, kind: input, shape index: {}]
  %s2 = inlined_call_operand.vmem [shape: f32[32,1], index: 2, kind: input, shape index: {}]
  %s3 = inlined_call_operand.<no memory space> [shape: f32[1], index: 3, kind: input, shape index: {}]
  %s4 = inlined_call_operand.hbm [shape: f32[1,8192], index: 4, kind: output, shape index: {}]
  %s5 = sld [smem:[#allocation0]]
  $region53: #{tpu_custom_call.1} parent=0
    _
  %s7 = ssub.s32 1, %s5
  %s8 = scalar_select 0, %s7, %s5
  %9 = sst [smem:[#allocation2]] %s3
  $region1: #{tpu_custom_call.1} parent=0
    #allocation3 [shape = 'u8[262144]{0}', space=vmem, size = 0x40000, scoped, tag = 'input window, operand 0']
    #allocation4 [shape = 's32[2]{0}', space=sflag, size = 0x8, scoped, tag = 'scoped memory for tpu_custom_call.1']
    #allocation5 [shape = 's32[2]{0}', space=sflag, size = 0x8, scoped, tag = 'scoped memory for tpu_custom_call.1']
    #allocation6 [shape = 'u8[8192]{0}', space=vmem, size = 0x2000, scoped, tag = 'output window, operand 0']
    %10 = vsyncpa [#allocation4], 0
    %s11 = scalar_lea.sflag [#allocation4], 1
    %12 = vsyncpa %s11, 0
    %13 = vsyncpa [#allocation5], 0
    %s14 = scalar_lea.sflag [#allocation5], 1
    %15 = vsyncpa %s14, 0
    loop: start=0, step=1, limit=10
    $region2: #{tpu_custom_call.1} parent=1 // loop_pre_header
      _
    $region3: #{tpu_custom_call.1} parent=1 // loop_header
      %s17 = sphi 0, %s21
      %p18 = scmp.ge.s32.totalorder %s17, 10
      %s27 = sphi 0, %s29
      %s30 = sphi 0, %s27
      %s31 = sphi 0, %s30
      %s47 = sphi 0, %s31
      %s51 = sphi 0, %s51
      %s53 = sphi 0, %s51
      %s54 = sphi 0, %s53
      %s68 = sphi 0, %s54
      %s72 = sphi 0, %s72
      %s74 = sphi 0, %s72
      %s75 = sphi 0, %s74
      %s89 = sphi 0, %s75
      %s93 = sphi 0, %s93
      %s95 = sphi 0, %s93
      %s96 = sphi 0, %s95
      %s110 = sphi 0, %s96
      %s116 = sphi 0, %s118
      %s119 = sphi 0, %s116
      %s120 = sphi 0, %s119
      %s136 = sphi 0, %s120
    $region4: #{tpu_custom_call.1} parent=1 // loop_header_branch
      %20 = sbr.rel (%p18) target = $region8
    $region5: #{tpu_custom_call.1} parent=1 // loop_body
      %s22 = ssub.s32 %s17, 1
      %s23 = ssub.s32 %s17, 2
      %s24 = sadd.s32 %s17, 1
      %s25 = ssub.s32 %s17, %s24
      %p26 = scmp.eq.s32.totalorder %s25, 0
      %s28 = sadd.s32 %s27, 1
      %s29 = scalar_select %p26, %s27, %s28
      %p32 = pneg %p26
      %p33 = scmp.eq.s32.totalorder %s17, 7
      %p34 = por %p32, %p33
      %p35 = scmp.ne.s32.totalorder %s27, %s30
      %p36 = scmp.eq.s32.totalorder %s17, 0
      %p37 = por %p35, %p36
      %p38 = scmp.ne.s32.totalorder %s27, %s30
      %p39 = scmp.eq.s32.totalorder %s22, 7
      %p40 = por %p38, %p39
      %p41 = scmp.ne.s32.totalorder %s30, %s31
      %p42 = scmp.eq.s32.totalorder %s22, 0
      %p43 = por %p41, %p42
      %p44 = scmp.ne.s32.totalorder %s30, %s31
      %p45 = scmp.eq.s32.totalorder %s23, 7
      %p46 = por %p44, %p45
      %p48 = scmp.ne.s32.totalorder %s31, %s47
      %p49 = scmp.eq.s32.totalorder %s23, 0
      %p50 = por %p48, %p49
      %s52 = sadd.s32 %s51, 1
      %p55 = scmp.eq.s32.totalorder %s17, 7
      %p56 = scmp.ne.s32.totalorder %s51, %s53
      %p57 = scmp.eq.s32.totalorder %s17, 0
      %p58 = por %p56, %p57
      %p59 = scmp.ne.s32.totalorder %s51, %s53
      %p60 = scmp.eq.s32.totalorder %s22, 7
      %p61 = por %p59, %p60
      %p62 = scmp.ne.s32.totalorder %s53, %s54
      %p63 = scmp.eq.s32.totalorder %s22, 0
      %p64 = por %p62, %p63
      %p65 = scmp.ne.s32.totalorder %s53, %s54
      %p66 = scmp.eq.s32.totalorder %s23, 7
      %p67 = por %p65, %p66
      %p69 = scmp.ne.s32.totalorder %s54, %s68
      %p70 = scmp.eq.s32.totalorder %s23, 0
      %p71 = por %p69, %p70
      %s73 = sadd.s32 %s72, 1
      %p76 = scmp.eq.s32.totalorder %s17, 7
      %p77 = scmp.ne.s32.totalorder %s72, %s74
      %p78 = scmp.eq.s32.totalorder %s17, 0
      %p79 = por %p77, %p78
      %p80 = scmp.ne.s32.totalorder %s72, %s74
      %p81 = scmp.eq.s32.totalorder %s22, 7
      %p82 = por %p80, %p81
      %p83 = scmp.ne.s32.totalorder %s74, %s75
      %p84 = scmp.eq.s32.totalorder %s22, 0
      %p85 = por %p83, %p84
      %p86 = scmp.ne.s32.totalorder %s74, %s75
      %p87 = scmp.eq.s32.totalorder %s23, 7
      %p88 = por %p86, %p87
      %p90 = scmp.ne.s32.totalorder %s75, %s89
      %p91 = scmp.eq.s32.totalorder %s23, 0
      %p92 = por %p90, %p91
      %s94 = sadd.s32 %s93, 1
      %p97 = scmp.eq.s32.totalorder %s17, 7
      %p98 = scmp.ne.s32.totalorder %s93, %s95
      %p99 = scmp.eq.s32.totalorder %s17, 0
      %p100 = por %p98, %p99
      %p101 = scmp.ne.s32.totalorder %s93, %s95
      %p102 = scmp.eq.s32.totalorder %s22, 7
      %p103 = por %p101, %p102
      %p104 = scmp.ne.s32.totalorder %s95, %s96
      %p105 = scmp.eq.s32.totalorder %s22, 0
      %p106 = por %p104, %p105
      %p107 = scmp.ne.s32.totalorder %s95, %s96
      %p108 = scmp.eq.s32.totalorder %s23, 7
      %p109 = por %p107, %p108
      %p111 = scmp.ne.s32.totalorder %s96, %s110
      %p112 = scmp.eq.s32.totalorder %s23, 0
      %p113 = por %p111, %p112
      %s114 = ssub.s32 %s17, %s24
      %p115 = scmp.eq.s32.totalorder %s114, 0
      %s117 = sadd.s32 %s116, 1
      %s118 = scalar_select %p115, %s116, %s117
      %p121 = pneg %p115
      %p122 = scmp.eq.s32.totalorder %s17, 7
      %p123 = por %p121, %p122
      %p124 = scmp.ne.s32.totalorder %s116, %s119
      %p125 = scmp.eq.s32.totalorder %s17, 0
      %p126 = por %p124, %p125
      %p127 = scmp.ne.s32.totalorder %s116, %s119
      %p128 = scmp.eq.s32.totalorder %s22, 7
      %p129 = por %p127, %p128
      %p130 = scmp.ne.s32.totalorder %s119, %s120
      %p131 = scmp.eq.s32.totalorder %s22, 0
      %p132 = por %p130, %p131
      %p133 = scmp.ne.s32.totalorder %s119, %s120
      %p134 = scmp.eq.s32.totalorder %s23, 7
      %p135 = por %p133, %p134
      %p137 = scmp.ne.s32.totalorder %s120, %s136
      %p138 = scmp.eq.s32.totalorder %s23, 0
      %p139 = por %p137, %p138
      %p140 = scmp.le.s32.totalorder 1, %s17
      %p141 = scmp.lt.s32.totalorder %s17, 9
      %p142 = pnand %p140, %p141
      %p143 = pneg %p142
      // Predicated region
      $region9: #{tpu_custom_call.1} parent=5 // pred_check
        _
      $region10: #{tpu_custom_call.1} parent=5 // pred_check_branch
        %145 = sbr.rel (%p142) target = $region12
      $region11: #{tpu_custom_call.1} parent=5 // pred_region
        %s146 = ssub.s32 %s17, 1
        // Predicated region
        $region13: #{tpu_custom_call.1} parent=11 // pred_check
          %p147 = pneg %p64
        $region14: #{tpu_custom_call.1} parent=11 // pred_check_branch
          %149 = sbr.rel (%p147) target = $region16
        $region15: #{tpu_custom_call.1} parent=11 // pred_region
          _
        $region16: #{tpu_custom_call.1} parent=11 // pred_fallthru
          _
        // Predicated region
        $region17: #{tpu_custom_call.1} parent=11 // pred_check
          %p150 = pneg %p85
        $region18: #{tpu_custom_call.1} parent=11 // pred_check_branch
          %152 = sbr.rel (%p150) target = $region20
        $region19: #{tpu_custom_call.1} parent=11 // pred_region
          _
        $region20: #{tpu_custom_call.1} parent=11 // pred_fallthru
          _
        // Predicated region
        $region21: #{tpu_custom_call.1} parent=11 // pred_check
          %p153 = pneg %p106
        $region22: #{tpu_custom_call.1} parent=11 // pred_check_branch
          %155 = sbr.rel (%p153) target = $region24
        $region23: #{tpu_custom_call.1} parent=11 // pred_region
          _
        $region24: #{tpu_custom_call.1} parent=11 // pred_fallthru
          _
      $region12: #{tpu_custom_call.1} parent=5 // pred_fallthru
        _
      %p156 = scmp.lt.s32.totalorder %s17, 8
      // Predicated region
      $region25: #{tpu_custom_call.1} parent=5 // pred_check
        %p157 = pneg %p156
      $region26: #{tpu_custom_call.1} parent=5 // pred_check_branch
        %159 = sbr.rel (%p157) target = $region28
      $region27: #{tpu_custom_call.1} parent=5 // pred_region
        // Predicated region
        $region29: #{tpu_custom_call.1} parent=27 // pred_check
          %p160 = pneg %p37
        $region30: #{tpu_custom_call.1} parent=27 // pred_check_branch
          %162 = sbr.rel (%p160) target = $region32
        $region31: #{tpu_custom_call.1} parent=27 // pred_region
          %s163 = sand.u32 %s27, 1
          %s164 = scalar_lea.sflag [#allocation4], %s163
          %s165 = sand.u32 %s27, 1
          %s166 = smul.addr %s165, 256
          %s167 = scalar_lea.vmem [#allocation3], %s166
          %s168 = smul.u32 8, %s17
          %170 = vsyncadd %s164, 0
          %s171 = smul.addr %s168, 8
          %s172 = scalar_lea.hbm %s0, %s171
          %s173 = sshll.u32 %s172, 4
          %s174 = int_to_ptr.hbm [resolvable:$true] %s173
          %s175 = sshll.u32 %s167, 4
          %s176 = int_to_ptr.vmem [resolvable:$true] %s175
          %181 = dma.hbm_to_vmem [thread:$0]  %s174, 4096, %s176, %s164, 8192, 1024, 64
        $region32: #{tpu_custom_call.1} parent=27 // pred_fallthru
          _
      $region28: #{tpu_custom_call.1} parent=5 // pred_fallthru
        _
      %p182 = scmp.le.s32.totalorder 1, %s17
      %p183 = scmp.lt.s32.totalorder %s17, 9
      %p184 = pnand %p182, %p183
      %p185 = pneg %p184
      // Predicated region
      $region33: #{tpu_custom_call.1} parent=5 // pred_check
        _
      $region34: #{tpu_custom_call.1} parent=5 // pred_check_branch
        %187 = sbr.rel (%p184) target = $region36
      $region35: #{tpu_custom_call.1} parent=5 // pred_region
        %s188 = ssub.s32 %s17, 1
        %s189 = sand.u32 %s30, 1
        %s190 = scalar_lea.sflag [#allocation4], %s189
        %s191 = sand.u32 %s30, 1
        %s192 = smul.addr %s191, 256
        %s193 = scalar_lea.vmem [#allocation3], %s192
        // Predicated region
        $region37: #{tpu_custom_call.1} parent=35 // pred_check
          %p194 = pneg %p43
        $region38: #{tpu_custom_call.1} parent=35 // pred_check_branch
          %196 = sbr.rel (%p194) target = $region40
        $region39: #{tpu_custom_call.1} parent=35 // pred_region
          %198 = dma.done %s190, 4096
        $region40: #{tpu_custom_call.1} parent=35 // pred_fallthru
          _
        %s199 = sand.u32 %s30, 1
        %s200 = scalar_lea.sflag [#allocation4], %s199
        %s201 = sand.u32 %s30, 1
        %s202 = smul.addr %s201, 256
        %s203 = scalar_lea.vmem [#allocation3], %s202
        %p204 = pneg %p43
        %p205 = pneg %p40
        %p206 = pneg %p64
        %p207 = pneg %p61
        %p208 = pneg %p85
        %p209 = pneg %p82
        %p210 = pneg %p106
        %p211 = pneg %p103
        %p212 = pneg %p132
        %p213 = pneg %p129
        %s214 = sand.u32 %s119, 1
        %s215 = scalar_lea.sflag [#allocation5], %s214
        %s216 = sand.u32 %s119, 1
        %s217 = smul.addr %s216, 8
        %s218 = scalar_lea.vmem [#allocation6], %s217
        %s219 = smul.u32 8, %s22
        %s220 = smul.u32 8, %s22
        %v221 = vld [vmem:[%s193] sm:$0xff]
        %v222 = vld [vmem:[%s193 + $0x8] sm:$0xff]
        %v223 = vld [vmem:[%s193 + $0x10] sm:$0xff]
        %v224 = vld [vmem:[%s193 + $0x18] sm:$0xff]
        %v225 = vld [vmem:[%s193 + $0x20] sm:$0xff]
        %v226 = vld [vmem:[%s193 + $0x28] sm:$0xff]
        %v227 = vld [vmem:[%s193 + $0x30] sm:$0xff]
        %v228 = vld [vmem:[%s193 + $0x38] sm:$0xff]
        %v229 = vld [vmem:[%s193 + $0x40] sm:$0xff]
        %v230 = vld [vmem:[%s193 + $0x48] sm:$0xff]
        %v231 = vld [vmem:[%s193 + $0x50] sm:$0xff]
        %v232 = vld [vmem:[%s193 + $0x58] sm:$0xff]
        %v233 = vld [vmem:[%s193 + $0x60] sm:$0xff]
        %v234 = vld [vmem:[%s193 + $0x68] sm:$0xff]
        %v235 = vld [vmem:[%s193 + $0x70] sm:$0xff]
        %v236 = vld [vmem:[%s193 + $0x78] sm:$0xff]
        %v237 = vld [vmem:[%s193 + $0x80] sm:$0xff]
        %v238 = vld [vmem:[%s193 + $0x88] sm:$0xff]
        %v239 = vld [vmem:[%s193 + $0x90] sm:$0xff]
        %v240 = vld [vmem:[%s193 + $0x98] sm:$0xff]
        %v241 = vld [vmem:[%s193 + $0xa0] sm:$0xff]
        %v242 = vld [vmem:[%s193 + $0xa8] sm:$0xff]
        %v243 = vld [vmem:[%s193 + $0xb0] sm:$0xff]
        %v244 = vld [vmem:[%s193 + $0xb8] sm:$0xff]
        %v245 = vld [vmem:[%s193 + $0xc0] sm:$0xff]
        %v246 = vld [vmem:[%s193 + $0xc8] sm:$0xff]
        %v247 = vld [vmem:[%s193 + $0xd0] sm:$0xff]
        %v248 = vld [vmem:[%s193 + $0xd8] sm:$0xff]
        %v249 = vld [vmem:[%s193 + $0xe0] sm:$0xff]
        %v250 = vld [vmem:[%s193 + $0xe8] sm:$0xff]
        %v251 = vld [vmem:[%s193 + $0xf0] sm:$0xff]
        %v252 = vld [vmem:[%s193 + $0xf8] sm:$0xff]
        %v253 = vld [vmem:[%s1] sm:$0xff]
        %v254 = vld [vmem:[%s1 + $0x8] sm:$0xff]
        %v255 = vld [vmem:[%s1 + $0x10] sm:$0xff]
        %v256 = vld [vmem:[%s1 + $0x18] sm:$0xff]
        %258 = vset.pattern.permute.xlu0 0
        %259 = vperm.xlu0 %258, %v253
        %v260 = vpop.permute.xlu0 %259
        %263 = vset.pattern.permute.xlu0 0
        %264 = vperm.xlu0 %263, %v254
        %v265 = vpop.permute.xlu0 %264
        %268 = vset.pattern.permute.xlu0 0
        %269 = vperm.xlu0 %268, %v255
        %v270 = vpop.permute.xlu0 %269
        %273 = vset.pattern.permute.xlu0 0
        %274 = vperm.xlu0 %273, %v256
        %v275 = vpop.permute.xlu0 %274
        %v277 = vadd.f32 %v221, %v260
        %v278 = vadd.f32 %v222, %v260
        %v279 = vadd.f32 %v223, %v260
        %v280 = vadd.f32 %v224, %v260
        %v281 = vadd.f32 %v225, %v260
        %v282 = vadd.f32 %v226, %v260
        %v283 = vadd.f32 %v227, %v260
        %v284 = vadd.f32 %v228, %v260
        %v285 = vadd.f32 %v229, %v265
        %v286 = vadd.f32 %v230, %v265
        %v287 = vadd.f32 %v231, %v265
        %v288 = vadd.f32 %v232, %v265
        %v289 = vadd.f32 %v233, %v265
        %v290 = vadd.f32 %v234, %v265
        %v291 = vadd.f32 %v235, %v265
        %v292 = vadd.f32 %v236, %v265
        %v293 = vadd.f32 %v237, %v270
        %v294 = vadd.f32 %v238, %v270
        %v295 = vadd.f32 %v239, %v270
        %v296 = vadd.f32 %v240, %v270
        %v297 = vadd.f32 %v241, %v270
        %v298 = vadd.f32 %v242, %v270
        %v299 = vadd.f32 %v243, %v270
        %v300 = vadd.f32 %v244, %v270
        %v301 = vadd.f32 %v245, %v275
        %v302 = vadd.f32 %v246, %v275
        %v303 = vadd.f32 %v247, %v275
        %v304 = vadd.f32 %v248, %v275
        %v305 = vadd.f32 %v249, %v275
        %v306 = vadd.f32 %v250, %v275
        %v307 = vadd.f32 %v251, %v275
        %v308 = vadd.f32 %v252, %v275
        %v309 = vmax.f32 %v277, 0.0
        %v310 = vmax.f32 %v278, 0.0
        %v311 = vmax.f32 %v279, 0.0
        %v312 = vmax.f32 %v280, 0.0
        %v313 = vmax.f32 %v281, 0.0
        %v314 = vmax.f32 %v282, 0.0
        %v315 = vmax.f32 %v283, 0.0
        %v316 = vmax.f32 %v284, 0.0
        %v317 = vmax.f32 %v285, 0.0
        %v318 = vmax.f32 %v286, 0.0
        %v319 = vmax.f32 %v287, 0.0
        %v320 = vmax.f32 %v288, 0.0
        %v321 = vmax.f32 %v289, 0.0
        %v322 = vmax.f32 %v290, 0.0
        %v323 = vmax.f32 %v291, 0.0
        %v324 = vmax.f32 %v292, 0.0
        %v325 = vmax.f32 %v293, 0.0
        %v326 = vmax.f32 %v294, 0.0
        %v327 = vmax.f32 %v295, 0.0
        %v328 = vmax.f32 %v296, 0.0
        %v329 = vmax.f32 %v297, 0.0
        %v330 = vmax.f32 %v298, 0.0
        %v331 = vmax.f32 %v299, 0.0
        %v332 = vmax.f32 %v300, 0.0
        %v333 = vmax.f32 %v301, 0.0
        %v334 = vmax.f32 %v302, 0.0
        %v335 = vmax.f32 %v303, 0.0
        %v336 = vmax.f32 %v304, 0.0
        %v337 = vmax.f32 %v305, 0.0
        %v338 = vmax.f32 %v306, 0.0
        %v339 = vmax.f32 %v307, 0.0
        %v340 = vmax.f32 %v308, 0.0
        %v341 = vld [vmem:[%s2] sm:$0xff]
        %v342 = vld [vmem:[%s2 + $0x8] sm:$0xff]
        %v343 = vld [vmem:[%s2 + $0x10] sm:$0xff]
        %v344 = vld [vmem:[%s2 + $0x18] sm:$0xff]
        %346 = vset.pattern.permute.xlu0 0
        %347 = vperm.xlu0 %346, %v341
        %v348 = vpop.permute.xlu0 %347
        %351 = vset.pattern.permute.xlu0 0
        %352 = vperm.xlu0 %351, %v342
        %v353 = vpop.permute.xlu0 %352
        %356 = vset.pattern.permute.xlu0 0
        %357 = vperm.xlu0 %356, %v343
        %v358 = vpop.permute.xlu0 %357
        %361 = vset.pattern.permute.xlu0 0
        %362 = vperm.xlu0 %361, %v344
        %v363 = vpop.permute.xlu0 %362
        %v365 = vmul.f32 %v309, %v348
        %v366 = vmul.f32 %v310, %v348
        %v367 = vmul.f32 %v311, %v348
        %v368 = vmul.f32 %v312, %v348
        %v369 = vmul.f32 %v313, %v348
        %v370 = vmul.f32 %v314, %v348
        %v371 = vmul.f32 %v315, %v348
        %v372 = vmul.f32 %v316, %v348
        %v373 = vmul.f32 %v317, %v353
        %v374 = vmul.f32 %v318, %v353
        %v375 = vmul.f32 %v319, %v353
        %v376 = vmul.f32 %v320, %v353
        %v377 = vmul.f32 %v321, %v353
        %v378 = vmul.f32 %v322, %v353
        %v379 = vmul.f32 %v323, %v353
        %v380 = vmul.f32 %v324, %v353
        %v381 = vmul.f32 %v325, %v358
        %v382 = vmul.f32 %v326, %v358
        %v383 = vmul.f32 %v327, %v358
        %v384 = vmul.f32 %v328, %v358
        %v385 = vmul.f32 %v329, %v358
        %v386 = vmul.f32 %v330, %v358
        %v387 = vmul.f32 %v331, %v358
        %v388 = vmul.f32 %v332, %v358
        %v389 = vmul.f32 %v333, %v363
        %v390 = vmul.f32 %v334, %v363
        %v391 = vmul.f32 %v335, %v363
        %v392 = vmul.f32 %v336, %v363
        %v393 = vmul.f32 %v337, %v363
        %v394 = vmul.f32 %v338, %v363
        %v395 = vmul.f32 %v339, %v363
        %v396 = vmul.f32 %v340, %v363
        %v397 = vadd.f32 %v365, %v373
        %v398 = vadd.f32 %v397, %v381
        %v399 = vadd.f32 %v398, %v389
        %v400 = vrot.slane %v399, 4
        %v401 = vadd.f32 %v399, %v400
        %v402 = vrot.slane %v401, 2
        %v403 = vadd.f32 %v401, %v402
        %v404 = vrot.slane %v403, 1
        %v405 = vadd.f32 %v403, %v404
        %v406 = vadd.f32 %v366, %v374
        %v407 = vadd.f32 %v406, %v382
        %v408 = vadd.f32 %v407, %v390
        %v409 = vrot.slane %v408, 4
        %v410 = vadd.f32 %v408, %v409
        %v411 = vrot.slane %v410, 2
        %v412 = vadd.f32 %v410, %v411
        %v413 = vrot.slane %v412, 1
        %v414 = vadd.f32 %v412, %v413
        %v415 = vadd.f32 %v367, %v375
        %v416 = vadd.f32 %v415, %v383
        %v417 = vadd.f32 %v416, %v391
        %v418 = vrot.slane %v417, 4
        %v419 = vadd.f32 %v417, %v418
        %v420 = vrot.slane %v419, 2
        %v421 = vadd.f32 %v419, %v420
        %v422 = vrot.slane %v421, 1
        %v423 = vadd.f32 %v421, %v422
        %v424 = vadd.f32 %v368, %v376
        %v425 = vadd.f32 %v424, %v384
        %v426 = vadd.f32 %v425, %v392
        %v427 = vrot.slane %v426, 4
        %v428 = vadd.f32 %v426, %v427
        %v429 = vrot.slane %v428, 2
        %v430 = vadd.f32 %v428, %v429
        %v431 = vrot.slane %v430, 1
        %v432 = vadd.f32 %v430, %v431
        %v433 = vadd.f32 %v369, %v377
        %v434 = vadd.f32 %v433, %v385
        %v435 = vadd.f32 %v434, %v393
        %v436 = vrot.slane %v435, 4
        %v437 = vadd.f32 %v435, %v436
        %v438 = vrot.slane %v437, 2
        %v439 = vadd.f32 %v437, %v438
        %v440 = vrot.slane %v439, 1
        %v441 = vadd.f32 %v439, %v440
        %v442 = vadd.f32 %v370, %v378
        %v443 = vadd.f32 %v442, %v386
        %v444 = vadd.f32 %v443, %v394
        %v445 = vrot.slane %v444, 4
        %v446 = vadd.f32 %v444, %v445
        %v447 = vrot.slane %v446, 2
        %v448 = vadd.f32 %v446, %v447
        %v449 = vrot.slane %v448, 1
        %v450 = vadd.f32 %v448, %v449
        %v451 = vadd.f32 %v371, %v379
        %v452 = vadd.f32 %v451, %v387
        %v453 = vadd.f32 %v452, %v395
        %v454 = vrot.slane %v453, 4
        %v455 = vadd.f32 %v453, %v454
        %v456 = vrot.slane %v455, 2
        %v457 = vadd.f32 %v455, %v456
        %v458 = vrot.slane %v457, 1
        %v459 = vadd.f32 %v457, %v458
        %v460 = vadd.f32 %v372, %v380
        %v461 = vadd.f32 %v460, %v388
        %v462 = vadd.f32 %v461, %v396
        %v463 = vrot.slane %v462, 4
        %v464 = vadd.f32 %v462, %v463
        %v465 = vrot.slane %v464, 2
        %v466 = vadd.f32 %v464, %v465
        %v467 = vrot.slane %v466, 1
        %v468 = vadd.f32 %v466, %v467
        %s469 = sld [smem:[#allocation2]]
        %v470 = vstv %s469
        %v471 = vadd.f32 %v405, %v470
        %v472 = vadd.f32 %v414, %v470
        %v473 = vadd.f32 %v423, %v470
        %v474 = vadd.f32 %v432, %v470
        %v475 = vadd.f32 %v441, %v470
        %v476 = vadd.f32 %v450, %v470
        %v477 = vadd.f32 %v459, %v470
        %v478 = vadd.f32 %v468, %v470
        %v487 = vrot.slane %v472, 7
        %v488 = vrot.slane %v473, 6
        %v489 = vrot.slane %v474, 5
        %v490 = vrot.slane %v475, 4
        %v491 = vrot.slane %v476, 3
        %v492 = vrot.slane %v477, 2
        %v493 = vrot.slane %v478, 1
        %vm494 = vcmask 1040384
        %v495 = vsel %vm494, %v471, %v487
        %vm496 = vcmask 1042434
        %v497 = vsel %vm496, %v488, %v489
        %vm498 = vcmask 1041408
        %v499 = vsel %vm498, %v495, %v497
        %vm500 = vcmask 1044484
        %v501 = vsel %vm500, %v490, %v491
        %vm502 = vcmask 1046534
        %v503 = vsel %vm502, %v492, %v493
        %vm504 = vcmask 1045508
        %v505 = vsel %vm504, %v501, %v503
        %vm506 = vcmask 1043456
        %v507 = vsel %vm506, %v499, %v505
        %509 = vst [vmem:[%s218] sm:$0xff] %v507
        %s510 = sand.u32 %s119, 1
        %s511 = scalar_lea.sflag [#allocation5], %s510
        %s512 = sand.u32 %s119, 1
        %s513 = smul.addr %s512, 8
        %s514 = scalar_lea.vmem [#allocation6], %s513
        // Predicated region
        $region41: #{tpu_custom_call.1} parent=35 // pred_check
          %p515 = pneg %p129
        $region42: #{tpu_custom_call.1} parent=35 // pred_check_branch
          %517 = sbr.rel (%p515) target = $region44
        $region43: #{tpu_custom_call.1} parent=35 // pred_region
          %s518 = smul.u32 8, %s22
          %520 = vsyncadd %s511, 0
          %s521 = scalar_lea.hbm %s4, %s518
          %s523 = sshll.u32 %s514, 4
          %s524 = int_to_ptr.vmem [resolvable:$true] %s523
          %s525 = sshll.u32 %s521, 4
          %s526 = int_to_ptr.hbm [resolvable:$true] %s525
          %528 = dma.vmem_to_hbm [thread:$0]  %s524, 128, %s526, %s511
        $region44: #{tpu_custom_call.1} parent=35 // pred_fallthru
          _
      $region36: #{tpu_custom_call.1} parent=5 // pred_fallthru
        _
      %p529 = scmp.le.s32.totalorder 2, %s17
      // Predicated region
      $region45: #{tpu_custom_call.1} parent=5 // pred_check
        %p530 = pneg %p529
      $region46: #{tpu_custom_call.1} parent=5 // pred_check_branch
        %532 = sbr.rel (%p530) target = $region48
      $region47: #{tpu_custom_call.1} parent=5 // pred_region
        %s533 = ssub.s32 %s17, 2
        // Predicated region
        $region49: #{tpu_custom_call.1} parent=47 // pred_check
          %p534 = pneg %p135
        $region50: #{tpu_custom_call.1} parent=47 // pred_check_branch
          %536 = sbr.rel (%p534) target = $region52
        $region51: #{tpu_custom_call.1} parent=47 // pred_region
          %s537 = sand.u32 %s120, 1
          %s538 = scalar_lea.sflag [#allocation5], %s537
          %s539 = sand.u32 %s120, 1
          %s540 = smul.addr %s539, 8
          %s541 = scalar_lea.vmem [#allocation6], %s540
          %543 = dma.done %s538, 128
        $region52: #{tpu_custom_call.1} parent=47 // pred_fallthru
          _
      $region48: #{tpu_custom_call.1} parent=5 // pred_fallthru
        _
    $region6: #{tpu_custom_call.1} parent=1 // loop_footer
      %s21 = sadd.s32 1, %s17
    $region7: #{tpu_custom_call.1} parent=1 // loop_footer_branch
      %16 = sbr.rel target = $region3
    $region8: #{tpu_custom_call.1} parent=1 // loop_exit
      _
    %544 = vsyncpa [#allocation4], 1
    %s545 = scalar_lea.sflag [#allocation4], 1
    %546 = vsyncpa %s545, 1
    %547 = vsyncpa [#allocation5], 1
    %s548 = scalar_lea.sflag [#allocation5], 1
    %549 = vsyncpa %s548, 1

</llo_original>
